<compile_context>
chip_gen: v5e
topology: v5e:2x2
jax: 0.10.0
libtpu: 0.0.40
codegen_flags: <defaults>
</compile_context>

<pallas_src>
import functools

import numpy as np
import jax
import jax.numpy as jnp
from jax import lax
from jax.experimental import pallas as pl
from jax.experimental.pallas import tpu as pltpu

NEG_SLOPE = 0.01  # F.leaky_relu default negative_slope


# ---------------------- pltpu.roll direction self-check ----------------------

@functools.lru_cache(maxsize=1)
def _roll_sign():
    """Sign r so that pltpu.roll(x, (r*s) % L, axis=1)[:, p] == x[:, (p+s) % L].

    pltpu.roll follows jnp.roll semantics (r == -1) on current JAX; a one-time
    probe kernel pins this down so the conv taps can never be silently flipped."""
    def k(x_ref, o_ref):
        o_ref[...] = pltpu.roll(x_ref[...], 1, axis=1)

    x = jnp.arange(8 * 128, dtype=jnp.float32).reshape(8, 128)
    rolled = pl.pallas_call(
        k, out_shape=jax.ShapeDtypeStruct((8, 128), jnp.float32))(x)
    return -1 if bool(jnp.all(rolled == jnp.roll(x, 1, axis=1))) else 1


# ----------------------------- fused Pallas kernel ----------------------------

def _autoencoder_kernel(x_ref, masks_ref, *refs, W, L, roll_sign,
                        layer_dims, acts):
    """Fully fused 7-layer forward pass for one grid step.

    x_ref      : (1, 1, L)        flattened image(s), L = batch_tile*H*W
    masks_ref  : (9, L)           0/1 "same"-padding mask per 3x3 tap
    refs[0:2n] : w0, b0, ..., w6, b6   w_l: (9, Cout_l, Cin_l),  b_l: (Cout_l, 1)
    refs[2n]   : (1, 1, L)        output block
    Activations live as (C, L) values: channels on sublanes, spatial on lanes.
    """
    n_layers = len(layer_dims)
    w_refs = refs[0:2 * n_layers:2]
    b_refs = refs[1:2 * n_layers:2]
    o_ref = refs[2 * n_layers]

    h = x_ref[0]                                     # (1, L): layer-0 input, Cin = 1

    for li, (cin, cout) in enumerate(layer_dims):
        w_ref = w_refs[li]
        acc = None
        for kh in range(3):
            for kw in range(3):
                t = kh * 3 + kw
                dh, dw = kh - 1, kw - 1
                w_t = w_ref[t]                       # (cout, cin) tap weight
                if dh == 0 and dw == 0:              # center tap: no shift, no mask
                    src = h
                    mask_after = None
                else:
                    shift = (roll_sign * (dh * W + dw)) % L
                    src = pltpu.roll(h, shift, axis=1)   # lane shift on the XLU
                    m = masks_ref[t:t + 1, :]            # (1, L) 0/1 mask
                    if cout < cin:                       # mask the smaller operand
                        mask_after = m
                    else:
                        src = src * m
                        mask_after = None
                if cin == 1:
                    # K = 1: outer product (cout,1)*(1,L) on the VPU, skip the MXU.
                    contrib = w_t * src
                else:
                    contrib = jnp.dot(w_t, src,
                                      preferred_element_type=jnp.float32)
                if mask_after is not None:
                    contrib = contrib * mask_after
                acc = contrib if acc is None else acc + contrib

        acc = acc + b_refs[li][...]                  # (cout, L) + (cout, 1)

        if acts[li] == "leaky_relu":
            h = jnp.where(acc >= 0, acc, NEG_SLOPE * acc)
        else:  # sigmoid, via EUP exp + reciprocal
            h = pl.reciprocal(1.0 + jnp.exp(-acc))

    o_ref[0] = h.astype(o_ref.dtype)                 # lane-dense (1, L) store


def _make_tap_masks(H, W, batch_tile):
    """(9, batch_tile*H*W) f32 0/1 validity mask per 3x3 tap ("same" padding)."""
    hh, ww = np.meshgrid(np.arange(H), np.arange(W), indexing="ij")
    rows = []
    for kh in range(3):
        for kw in range(3):
            dh, dw = kh - 1, kw - 1
            valid = ((hh + dh >= 0) & (hh + dh < H) &
                     (ww + dw >= 0) & (ww + dw < W))
            rows.append(np.tile(valid.reshape(-1), batch_tile))
    return jnp.asarray(np.stack(rows).astype(np.float32))


def autoencoder_fused(x_flat, packed_params, H, W, batch_tile=1):
    """x_flat: (N, H*W) f32.  packed_params: [(w_(9,Cout,Cin), b_(Cout,1), act)]."""
    N, HW = x_flat.shape
    assert HW == H * W and N % batch_tile == 0
    G = N // batch_tile                 # grid steps (keep >= 2 on v7x when possible)
    L = batch_tile * HW                 # lane width per grid step

    layer_dims = tuple((w.shape[2], w.shape[1]) for w, _, _ in packed_params)
    acts = tuple(a for _, _, a in packed_params)

    x_g = x_flat.reshape(G, 1, L)
    masks = _make_tap_masks(H, W, batch_tile)

    in_specs = [pl.BlockSpec((1, 1, L), lambda n: (n, 0, 0)),
                pl.BlockSpec(masks.shape, lambda n: (0, 0))]
    flat_in = [x_g, masks]
    for w, b, _ in packed_params:
        # Full-extent blocks + constant index maps: weights/biases are DMA'd once
        # and stay VMEM-resident across the (parallel) batch grid.
        in_specs.append(pl.BlockSpec(w.shape, lambda n: (0, 0, 0)))
        in_specs.append(pl.BlockSpec(b.shape, lambda n: (0, 0)))
        flat_in.extend([w, b])

    kernel = functools.partial(_autoencoder_kernel, W=W, L=L,
                               roll_sign=_roll_sign(),
                               layer_dims=layer_dims, acts=acts)
    out = pl.pallas_call(
        kernel,
        out_shape=jax.ShapeDtypeStruct((G, 1, L), jnp.float32),
        grid_spec=pltpu.PrefetchScalarGridSpec(
            num_scalar_prefetch=0,
            grid=(G,),
            in_specs=in_specs,
            out_specs=pl.BlockSpec((1, 1, L), lambda n: (n, 0, 0)),
        ),
        compiler_params=pltpu.CompilerParams(
            dimension_semantics=("parallel",)),
    )(*flat_in)
    return out.reshape(N, HW)


# ------------------ parameter construction (deterministic) ------------------

def _conv_weight_hwio(key, cout, cin, scale=0.1):
    """Regular Conv2d weight (PyTorch OIHW) -> HWIO (3, 3, Cin, Cout)."""
    w_oihw = scale * jax.random.normal(key, (cout, cin, 3, 3), dtype=jnp.float32)
    return jnp.transpose(w_oihw, (2, 3, 1, 0))


def _convT_weight_hwio(key, cin, cout, scale=0.1):
    """ConvTranspose2d weight (PyTorch IOHW (Cin, Cout, 3, 3)) -> equivalent
    regular-conv HWIO kernel: flip spatial dims, swap in/out channels."""
    w_iohw = scale * jax.random.normal(key, (cin, cout, 3, 3), dtype=jnp.float32)
    w_oihw = jnp.transpose(w_iohw[:, :, ::-1, ::-1], (1, 0, 2, 3))
    return jnp.transpose(w_oihw, (2, 3, 1, 0))


def make_params(key):
    ks = jax.random.split(key, 14)
    return [
        # (weight_HWIO, bias, activation)
        (_conv_weight_hwio(ks[0], 64, 1),    0.01 * jax.random.normal(ks[1],  (64,)), "leaky_relu"),  # enc1
        (_conv_weight_hwio(ks[2], 16, 64),   0.01 * jax.random.normal(ks[3],  (16,)), "leaky_relu"),  # enc3
        (_conv_weight_hwio(ks[4], 8, 16),    0.01 * jax.random.normal(ks[5],  (8,)),  "leaky_relu"),  # enc4
        (_convT_weight_hwio(ks[6], 8, 8),    0.01 * jax.random.normal(ks[7],  (8,)),  "leaky_relu"),  # dec1
        (_convT_weight_hwio(ks[8], 8, 16),   0.01 * jax.random.normal(ks[9],  (16,)), "leaky_relu"),  # dec2
        (_convT_weight_hwio(ks[10], 16, 64), 0.01 * jax.random.normal(ks[11], (64,)), "leaky_relu"),  # dec3
        (_conv_weight_hwio(ks[12], 1, 64),   0.01 * jax.random.normal(ks[13], (1,)),  "sigmoid"),     # out
    ]


def pack_params(params):
    """HWIO (3,3,Cin,Cout) -> tap-packed (9, Cout, Cin); bias -> (Cout, 1)."""
    packed = []
    for w_hwio, b, act in params:
        cin, cout = w_hwio.shape[2], w_hwio.shape[3]
        w = jnp.transpose(w_hwio, (0, 1, 3, 2)).reshape(9, cout, cin)
        packed.append((w.astype(jnp.float32),
                       b.reshape(cout, 1).astype(jnp.float32), act))
    return packed


def autoencoder_forward(x_nchw, params, batch_tile=1):
    """Matches the PyTorch interface: NCHW in, NCHW out."""
    N, C, H, W = x_nchw.shape
    assert C == 1
    packed = pack_params(params)
    y = autoencoder_fused(x_nchw.reshape(N, H * W), packed, H, W,
                          batch_tile=batch_tile)
    return y.reshape(N, 1, H, W)


# ---------------- pure-JAX reference for sanity checking -----------------

def _ref_forward(x_nchw, params):
    x_nhwc = jnp.transpose(x_nchw, (0, 2, 3, 1))
    dn = lax.conv_dimension_numbers(x_nhwc.shape, (3, 3, 1, 1),
                                    ("NHWC", "HWIO", "NHWC"))
    h = x_nhwc
    for w, b, act in params:
        h = lax.conv_general_dilated(h, w, window_strides=(1, 1), padding="SAME",
                                     dimension_numbers=dn,
                                     precision=lax.Precision.HIGHEST) + b
        if act == "leaky_relu":
            h = jnp.where(h >= 0, h, NEG_SLOPE * h)
        else:
            h = jax.nn.sigmoid(h)
    return jnp.transpose(h, (0, 3, 1, 2))


if __name__ == "__main__":
    key = jax.random.PRNGKey(0)
    kx, kp = jax.random.split(key)

    # PyTorch input layout: NCHW (2, 1, 16, 16).
    x_nchw = jax.random.normal(kx, (2, 1, 16, 16), dtype=jnp.float32)
    params = make_params(kp)

    out = jax.block_until_ready(autoencoder_forward(x_nchw, params))  # (2, 1, 16, 16)
    ref = jax.block_until_ready(_ref_forward(x_nchw, params))

    assert out.shape == (2, 1, 16, 16)
    err = float(jnp.max(jnp.abs(out - ref)))
    assert err < 1e-3, f"max abs err {err}"

    print("KERNEL_OK")
</pallas_src>

<mosaic_0001>
module attributes {stable_mosaic.version = 11 : i64} {
  func.func @k(%arg0: memref<8x128xf32, #tpu.memory_space<vmem>>, %arg1: memref<8x128xf32, #tpu.memory_space<vmem>>) attributes {dimension_semantics = [], scalar_prefetch = 0 : i64, scratch_operands = 0 : i64, tpu.core_type = #tpu.core_type<tc>} {
    %c0 = arith.constant 0 : index
    %c0_0 = arith.constant 0 : index
    %0 = vector.load %arg0[%c0, %c0_0] : memref<8x128xf32, #tpu.memory_space<vmem>>, vector<8x128xf32>
    %c1_i32 = arith.constant 1 : i32
    %1 = tpu.dynamic_rotate %0 by %c1_i32 dim 1 : vector<8x128xf32>, i32 -> vector<8x128xf32>
    %c0_1 = arith.constant 0 : index
    %c0_2 = arith.constant 0 : index
    %2 = vector.load %arg1[%c0_1, %c0_2] : memref<8x128xf32, #tpu.memory_space<vmem>>, vector<8x128xf32>
    tpu.vector_store %arg1[%c0_1, %c0_2], %1 {strides = array<i32>} : memref<8x128xf32, #tpu.memory_space<vmem>>, vector<8x128xf32>,
    return
  }
}

</mosaic_0001>

<llo_original>
// kernel: tpu_custom_call.1
$region0: #{tpu_custom_call.1}
  #allocation0 [shape = 'u32[]', space=smem, size = 0x4, offset = 0x4, fixed_abs, tag = 'smem constant byte address 0x4 - core index']
  #allocation1 [shape = 'u32[72,128]{1,0:T(1,128)}', space=vmem, size = 0x9000, scoped, tag = 'internal scratch']
  %s0 = inlined_call_operand.hbm [shape: f32[8,128], index: 0, kind: input, shape index: {}]
  %s1 = inlined_call_operand.hbm [shape: f32[8,128], index: 1, kind: output, shape index: {}]
  %s2 = sld [smem:[#allocation0]]
  $region18: #{tpu_custom_call.1} parent=0
    _
  %s4 = ssub.s32 1, %s2
  %s5 = scalar_select 0, %s4, %s2
  $region1: #{tpu_custom_call.1} parent=0
    #allocation2 [shape = 'u8[4096]{0}', space=vmem, size = 0x1000, scoped, tag = 'input window, operand 0, single buffered']
    #allocation3 [shape = 's32[1]{0}', space=sflag, size = 0x4, scoped, tag = 'scoped memory for tpu_custom_call.1']
    #allocation4 [shape = 's32[1]{0}', space=sflag, size = 0x4, scoped, tag = 'scoped memory for tpu_custom_call.1']
    #allocation5 [shape = 'u8[4096]{0}', space=vmem, size = 0x1000, scoped, tag = 'output window, operand 0, single buffered']
    %6 = vsyncpa [#allocation3], 0
    %7 = vsyncpa [#allocation4], 0
    // Predicated region
    $region2: #{tpu_custom_call.1} parent=1 // pred_check
      _
    $region3: #{tpu_custom_call.1} parent=1 // pred_check_branch
      %9 = sbr.rel (0) target = $region5
    $region4: #{tpu_custom_call.1} parent=1 // pred_region
      %11 = vsyncadd [#allocation3], 0
      %s13 = sshll.u32 %s0, 4
      %s14 = int_to_ptr.hbm [resolvable:$true] %s13
      %s15 = sshll.u32 [#allocation2], 4
      %s16 = int_to_ptr.vmem [resolvable:$true] %s15
      %18 = dma.hbm_to_vmem [thread:$0]  %s14, 128, %s16, [#allocation3]
    $region5: #{tpu_custom_call.1} parent=1 // pred_fallthru
      _
    // Predicated region
    $region6: #{tpu_custom_call.1} parent=1 // pred_check
      _
    $region7: #{tpu_custom_call.1} parent=1 // pred_check_branch
      %20 = sbr.rel (0) target = $region9
    $region8: #{tpu_custom_call.1} parent=1 // pred_region
      %22 = dma.done [#allocation3], 128
    $region9: #{tpu_custom_call.1} parent=1 // pred_fallthru
      _
    %v23 = vld [vmem:[#allocation2] sm:$0xff]
    %24 = vrot.lane.b32.xlu0 %v23, 1
    %v25 = vpop.permute.xlu0 %24
    %26 = vst [vmem:[#allocation5] sm:$0xff] %v25
    // Predicated region
    $region10: #{tpu_custom_call.1} parent=1 // pred_check
      _
    $region11: #{tpu_custom_call.1} parent=1 // pred_check_branch
      %28 = sbr.rel (0) target = $region13
    $region12: #{tpu_custom_call.1} parent=1 // pred_region
      %30 = vsyncadd [#allocation4], 0
      %s32 = sshll.u32 [#allocation5], 4
      %s33 = int_to_ptr.vmem [resolvable:$true] %s32
      %s34 = sshll.u32 %s1, 4
      %s35 = int_to_ptr.hbm [resolvable:$true] %s34
      %37 = dma.vmem_to_hbm [thread:$0]  %s33, 128, %s35, [#allocation4]
    $region13: #{tpu_custom_call.1} parent=1 // pred_fallthru
      _
    // Predicated region
    $region14: #{tpu_custom_call.1} parent=1 // pred_check
      _
    $region15: #{tpu_custom_call.1} parent=1 // pred_check_branch
      %39 = sbr.rel (0) target = $region17
    $region16: #{tpu_custom_call.1} parent=1 // pred_region
      %41 = dma.done [#allocation4], 128
    $region17: #{tpu_custom_call.1} parent=1 // pred_fallthru
      _
    %42 = vsyncpa [#allocation3], 1
    %43 = vsyncpa [#allocation4], 1

</llo_original>
